<compile_context>
chip_gen: v6e
topology: v6e:2x2x1
jax: 0.10.0
libtpu: 0.0.40
codegen_flags: <defaults>
</compile_context>

<pallas_src>
import math
import functools

import jax
import jax.numpy as jnp
from jax import lax
from jax.experimental import pallas as pl
from jax.experimental.pallas import tpu as pltpu


# ----------------------------------------------------------------------------
# helpers
# ----------------------------------------------------------------------------
def _round_up(x, m):
    return ((x + m - 1) // m) * m


def _pad2d(x, rows, cols):
    pr, pc = rows - x.shape[0], cols - x.shape[1]
    if pr == 0 and pc == 0:
        return x
    return jnp.pad(x, ((0, pr), (0, pc)))


# Total-VMEM budget used for tile sizing: fits v7x (64 MiB physical) with headroom,
# leaves plenty of slack on v5e/v6e (128 MiB).  Measured Pallas data: 512-1024 row
# tiles reach ~85% of the HBM roofline, hence the 1024 default request.
_VMEM_BUDGET = 40 << 20


def _pick_tile_n(n, d_pad, m_pad, resident_bytes, z_itemsize, requested):
    """Row-tile size: multiple of 8, budgeted against the FULL resident footprint
    (memory operands / accumulators), not just the streaming row tiles."""
    per_row = 2 * (z_itemsize * d_pad + 4 * d_pad + 4 * m_pad)   # 2 pipeline buffers
    stream_budget = max(_VMEM_BUDGET - resident_bytes, 2 << 20)
    cap = max(8, (stream_budget // per_row) // 8 * 8)
    tile = min(int(requested), cap, _round_up(n, 8))
    return max(8, (tile // 8) * 8)


def _vmem_limit(resident_bytes, tile_n, d_pad, m_pad, z_itemsize):
    per_row = 2 * (z_itemsize * d_pad + 4 * d_pad + 4 * m_pad)
    need = resident_bytes + tile_n * per_row + (4 << 20)
    return int(min(max(need, 32 << 20), 64 << 20))


def _invariant_spec(shape, index_map):
    """Grid-invariant operand: request a single pipeline buffer (the block never
    changes, so the second buffer is pure VMEM waste).  Falls back to the default
    double-buffered BlockSpec if this Pallas build lacks pipeline_mode."""
    try:
        return pl.BlockSpec(shape, index_map, pipeline_mode=pl.Buffered(1))
    except (TypeError, AttributeError):
        return pl.BlockSpec(shape, index_map)


def _itemsize(dtype):
    return jnp.finfo(dtype).bits // 8


# ----------------------------------------------------------------------------
# Forward-only kernel (eval mode / update_memory=False):
#   scores   = z @ (memory / T)^T       (memory pre-scaled + pre-transposed)
#   attn     = softmax(scores, -1)      (padded memory slots masked out)
#   attended = attn @ memory
# ----------------------------------------------------------------------------
def _fwd_kernel(z_ref, mem_t_ref, mem_ref, attended_ref, *attn_refs,
                m_actual, m_pad):
    z = z_ref[...]                                          # (tile_n, D_pad) mxu dtype
    scores = jnp.dot(z, mem_t_ref[...],
                     preferred_element_type=jnp.float32)    # (tile_n, M_pad) f32
    if m_actual < m_pad:                                    # mask padded memory slots
        col = lax.broadcasted_iota(jnp.int32, scores.shape, 1)
        scores = jnp.where(col < m_actual, scores, -1e30)

    mx = jnp.max(scores, axis=-1, keepdims=True)
    e = jnp.exp(scores - mx)
    denom = jnp.sum(e, axis=-1, keepdims=True)
    attn = e * pl.reciprocal(denom, approx=True)            # EUP reciprocal (free slot)

    if attn_refs:                                           # optional attn writeback
        attn_refs[0][...] = attn.astype(attn_refs[0].dtype)
    attended_ref[...] = jnp.dot(attn.astype(mem_ref.dtype), mem_ref[...],
                                preferred_element_type=jnp.float32)


def semantic_memory_forward(z, memory, temperature, *, tile_n=1024,
                            mxu_dtype=jnp.bfloat16, return_attn=True):
    """z: (B, S, D) f32, memory: (M, D) f32 -> (attended (B,S,D)[, attn (B,S,M)])."""
    B, S, D = z.shape
    M = memory.shape[0]
    N = B * S
    d_pad = _round_up(D, 128)
    m_pad = _round_up(M, 128)
    zi = _itemsize(mxu_dtype)

    # resident = both memory orientations (x2 buffers in case Buffered(1) is ignored)
    resident = 2 * 2 * d_pad * m_pad * zi
    tile_n = _pick_tile_n(N, d_pad, m_pad, resident, zi, tile_n)
    n_pad = _round_up(N, tile_n)

    inv_temp = 1.0 / float(temperature)
    z_p = _pad2d(z.reshape(N, D), n_pad, d_pad).astype(mxu_dtype)
    mem_t = _pad2d(memory * inv_temp, m_pad, d_pad).T.astype(mxu_dtype)  # (D_pad, M_pad)
    mem_p = _pad2d(memory, m_pad, d_pad).astype(mxu_dtype)               # (M_pad, D_pad)

    kernel = functools.partial(_fwd_kernel, m_actual=M, m_pad=m_pad)

    attended_struct = jax.ShapeDtypeStruct((n_pad, d_pad), jnp.float32)
    attended_spec = pl.BlockSpec((tile_n, d_pad), lambda i: (i, 0))
    if return_attn:
        out_shape = (attended_struct, jax.ShapeDtypeStruct((n_pad, m_pad), jnp.float32))
        out_specs = (attended_spec, pl.BlockSpec((tile_n, m_pad), lambda i: (i, 0)))
    else:
        out_shape = attended_struct
        out_specs = attended_spec

    out_bytes = 4 * n_pad * d_pad + (4 * n_pad * m_pad if return_attn else 0)
    cost = pl.CostEstimate(
        flops=int(4 * n_pad * d_pad * m_pad),
        transcendentals=int(n_pad * m_pad + n_pad),
        bytes_accessed=int(zi * (n_pad * d_pad + 2 * d_pad * m_pad) + out_bytes))

    outs = pl.pallas_call(
        kernel,
        out_shape=out_shape,
        grid=(n_pad // tile_n,),
        in_specs=[pl.BlockSpec((tile_n, d_pad), lambda i: (i, 0)),
                  _invariant_spec((d_pad, m_pad), lambda i: (0, 0)),
                  _invariant_spec((m_pad, d_pad), lambda i: (0, 0))],
        out_specs=out_specs,
        compiler_params=pltpu.CompilerParams(
            dimension_semantics=("parallel",),
            vmem_limit_bytes=_vmem_limit(resident, tile_n, d_pad, m_pad, zi)),
        cost_estimate=cost,
    )(z_p, mem_t, mem_p)

    if return_attn:
        attended_p, attn_p = outs
        return (attended_p[:N, :D].reshape(B, S, D),
                attn_p[:N, :M].reshape(B, S, M))
    return outs[:N, :D].reshape(B, S, D)


# ----------------------------------------------------------------------------
# Training path, call A: forward + per-chunk update statistics.
# Grid = (chunk, row-tile); chunk axis is "parallel" so v7x's two TensorCores each
# reduce their own chunk.  The (D_pad, M_pad) / (1, M_pad) statistics accumulate
# directly in output blocks that are resident across the inner ("arbitrary") axis.
# ----------------------------------------------------------------------------
def _fwd_stats_kernel(z_ref, mem_t_ref, mem_ref,
                      attended_ref, attn_ref, wi_ref, as_ref, *,
                      n_actual, n_pad, m_actual, m_pad, tile_n, tiles_per_chunk):
    c = pl.program_id(0)
    t = pl.program_id(1)

    @pl.when(t == 0)
    def _init():
        wi_ref[...] = jnp.zeros_like(wi_ref)
        as_ref[...] = jnp.zeros_like(as_ref)

    z = z_ref[...]                                          # (tile_n, D_pad) mxu dtype

    # ---- forward: attention read over the (old) memory ----------------------
    scores = jnp.dot(z, mem_t_ref[...], preferred_element_type=jnp.float32)
    if m_actual < m_pad:
        col = lax.broadcasted_iota(jnp.int32, scores.shape, 1)
        scores = jnp.where(col < m_actual, scores, -1e30)
    mx = jnp.max(scores, axis=-1, keepdims=True)
    e = jnp.exp(scores - mx)
    denom = jnp.sum(e, axis=-1, keepdims=True)
    attn = e / denom                                        # exact: feeds the update

    attn_ref[...] = attn.astype(attn_ref.dtype)
    attended_ref[...] = jnp.dot(attn.astype(mem_ref.dtype), mem_ref[...],
                                preferred_element_type=jnp.float32)

    # ---- accumulate update statistics (mask padded rows) ---------------------
    if n_actual < n_pad:
        row0 = (c * tiles_per_chunk + t) * tile_n
        row = lax.broadcasted_iota(jnp.int32, attn.shape, 0) + row0
        attn_acc = jnp.where(row < n_actual, attn, 0.0)
    else:
        attn_acc = attn

    # weighted_input^T = z^T @ attn : contract over the row axis (no transpose of
    # the big attn tile).
    wi_ref[...] += lax.dot_general(
        z, attn_acc.astype(z.dtype),
        dimension_numbers=(((0,), (0,)), ((), ())),
        preferred_element_type=jnp.float32)[None]           # (1, D_pad, M_pad)
    as_ref[...] += jnp.sum(attn_acc, axis=0, keepdims=True)[None]  # (1, 1, M_pad)


# ----------------------------------------------------------------------------
# Training path, call B: GRU-style memory rewrite, computed once in the
# transposed (D_pad, M_pad) domain; padded memory^T input is aliased in place.
# ----------------------------------------------------------------------------
def _gru_update_kernel(mem_t_ref, wi_ref, as_ref,
                       wg1_ref, wg2_ref, bg_ref,
                       wc1_ref, wc2_ref, bc_ref, new_mem_t_ref):
    mem_t = mem_t_ref[...]                                  # (D_pad, M_pad) f32
    attn_sum = jnp.maximum(as_ref[...], 1e-8)               # (1, M_pad)
    avg_t = wi_ref[...] / attn_sum                          # avg_input^T

    gate_t = jax.nn.sigmoid(
        jnp.dot(wg1_ref[...], mem_t, preferred_element_type=jnp.float32)
        + jnp.dot(wg2_ref[...], avg_t, preferred_element_type=jnp.float32)
        + bg_ref[...])
    cand_t = jnp.tanh(
        jnp.dot(wc1_ref[...], mem_t, preferred_element_type=jnp.float32)
        + jnp.dot(wc2_ref[...], avg_t, preferred_element_type=jnp.float32)
        + bc_ref[...])
    new_mem_t_ref[...] = gate_t * mem_t + (1.0 - gate_t) * cand_t


def semantic_memory_forward_and_update(z, memory, temperature,
                                       gate_w, gate_b, cand_w, cand_b, *,
                                       tile_n=1024, num_chunks=2,
                                       mxu_dtype=jnp.bfloat16):
    """Training-mode call: returns (attended, attention_weights, new_memory)."""
    B, S, D = z.shape
    M = memory.shape[0]
    N = B * S
    d_pad = _round_up(D, 128)
    m_pad = _round_up(M, 128)
    zi = _itemsize(mxu_dtype)

    # resident in call A: both memory orientations + accumulator output blocks
    resident = (2 * 2 * d_pad * m_pad * zi
                + 2 * 4 * (d_pad * m_pad + m_pad))
    tile_n = _pick_tile_n(N, d_pad, m_pad, resident, zi, tile_n)

    n_tiles = -(-N // tile_n)
    num_chunks_eff = max(1, min(int(num_chunks), n_tiles))
    tpc = -(-n_tiles // num_chunks_eff)                      # tiles per chunk
    n_pad = num_chunks_eff * tpc * tile_n

    inv_temp = 1.0 / float(temperature)
    z_p = _pad2d(z.reshape(N, D), n_pad, d_pad).astype(mxu_dtype)
    mem_t = _pad2d(memory * inv_temp, m_pad, d_pad).T.astype(mxu_dtype)  # (D_pad, M_pad)
    mem_p = _pad2d(memory, m_pad, d_pad).astype(mxu_dtype)               # (M_pad, D_pad)

    kernel = functools.partial(
        _fwd_stats_kernel, n_actual=N, n_pad=n_pad, m_actual=M, m_pad=m_pad,
        tile_n=tile_n, tiles_per_chunk=tpc)

    cost = pl.CostEstimate(
        flops=int(6 * n_pad * d_pad * m_pad),
        transcendentals=int(n_pad * m_pad),
        bytes_accessed=int(zi * (n_pad * d_pad + 2 * d_pad * m_pad)
                           + 4 * (n_pad * d_pad + n_pad * m_pad
                                  + num_chunks_eff * (d_pad * m_pad + m_pad))))

    attended_p, attn_p, wi_parts, as_parts = pl.pallas_call(
        kernel,
        out_shape=(jax.ShapeDtypeStruct((n_pad, d_pad), jnp.float32),
                   jax.ShapeDtypeStruct((n_pad, m_pad), jnp.float32),
                   jax.ShapeDtypeStruct((num_chunks_eff, d_pad, m_pad), jnp.float32),
                   jax.ShapeDtypeStruct((num_chunks_eff, 1, m_pad), jnp.float32)),
        grid=(num_chunks_eff, tpc),
        in_specs=[pl.BlockSpec((tile_n, d_pad), lambda c, t: (c * tpc + t, 0)),
                  _invariant_spec((d_pad, m_pad), lambda c, t: (0, 0)),
                  _invariant_spec((m_pad, d_pad), lambda c, t: (0, 0))],
        out_specs=(pl.BlockSpec((tile_n, d_pad), lambda c, t: (c * tpc + t, 0)),
                   pl.BlockSpec((tile_n, m_pad), lambda c, t: (c * tpc + t, 0)),
                   pl.BlockSpec((1, d_pad, m_pad), lambda c, t: (c, 0, 0)),
                   pl.BlockSpec((1, 1, m_pad), lambda c, t: (c, 0, 0))),
        compiler_params=pltpu.CompilerParams(
            dimension_semantics=("parallel", "arbitrary"),
            vmem_limit_bytes=_vmem_limit(resident, tile_n, d_pad, m_pad, zi)),
        cost_estimate=cost,
    )(z_p, mem_t, mem_p)

    # tiny cross-chunk combine (num_chunks_eff <= num_chunks, typically 2)
    wi_t = jnp.sum(wi_parts, axis=0)                         # weighted_input^T (D_pad, M_pad)
    attn_sums = jnp.sum(as_parts, axis=0)                    # (1, M_pad)

    # Linear(2D -> D) weights split into memory / avg-input halves, kept in the
    # (out_dim, in_dim) orientation so the transposed-domain update needs no
    # in-kernel transposes.  Everything here stays f32 (tiny, precision-critical).
    mem_t_f32 = _pad2d(memory, m_pad, d_pad).T               # (D_pad, M_pad) f32
    wg1 = _pad2d(gate_w[:, :D], d_pad, d_pad)
    wg2 = _pad2d(gate_w[:, D:], d_pad, d_pad)
    wc1 = _pad2d(cand_w[:, :D], d_pad, d_pad)
    wc2 = _pad2d(cand_w[:, D:], d_pad, d_pad)
    bg = _pad2d(gate_b.reshape(D, 1), d_pad, 1)
    bc = _pad2d(cand_b.reshape(D, 1), d_pad, 1)

    gru_vmem = int(min(max(8 * 4 * d_pad * m_pad + 16 * d_pad * d_pad + (4 << 20),
                           32 << 20), 64 << 20))
    gru_cost = pl.CostEstimate(
        flops=int(8 * d_pad * d_pad * m_pad),
        transcendentals=int(2 * d_pad * m_pad),
        bytes_accessed=int(4 * (4 * d_pad * m_pad + 4 * d_pad * d_pad + 2 * d_pad)))
    full = lambda shape: pl.BlockSpec(shape, lambda i: (0, 0))

    new_mem_t = pl.pallas_call(
        _gru_update_kernel,
        out_shape=jax.ShapeDtypeStruct((d_pad, m_pad), jnp.float32),
        grid=(1,),
        in_specs=[full((d_pad, m_pad)), full((d_pad, m_pad)), full((1, m_pad)),
                  full((d_pad, d_pad)), full((d_pad, d_pad)), full((d_pad, 1)),
                  full((d_pad, d_pad)), full((d_pad, d_pad)), full((d_pad, 1))],
        out_specs=full((d_pad, m_pad)),
        input_output_aliases={0: 0},        # in-place rewrite of the padded memory^T
        compiler_params=pltpu.CompilerParams(
            dimension_semantics=("arbitrary",), vmem_limit_bytes=gru_vmem),
        cost_estimate=gru_cost,
    )(mem_t_f32, wi_t, attn_sums, wg1, wg2, bg, wc1, wc2, bc)

    attended = attended_p[:N, :D].reshape(B, S, D)
    attn = attn_p[:N, :M].reshape(B, S, M)
    new_memory = new_mem_t[:D, :M].T                         # back to (M, D)
    return attended, attn, new_memory


# ----------------------------------------------------------------------------
# Deterministic parameter init (mimics the module's __init__ shapes)
# ----------------------------------------------------------------------------
def init_params(key, memory_size, latent_dim):
    k_mem, k_gw, k_gb, k_cw, k_cb = jax.random.split(key, 5)
    bound = math.sqrt(6.0 / (memory_size + latent_dim))       # xavier_uniform_
    memory = jax.random.uniform(k_mem, (memory_size, latent_dim),
                                jnp.float32, -bound, bound)
    fan_in = 2 * latent_dim
    w_bound = math.sqrt(1.0 / fan_in)
    gate_w = jax.random.uniform(k_gw, (latent_dim, 2 * latent_dim),
                                jnp.float32, -w_bound, w_bound)
    gate_b = jax.random.uniform(k_gb, (latent_dim,), jnp.float32, -w_bound, w_bound)
    cand_w = jax.random.uniform(k_cw, (latent_dim, 2 * latent_dim),
                                jnp.float32, -w_bound, w_bound)
    cand_b = jax.random.uniform(k_cb, (latent_dim,), jnp.float32, -w_bound, w_bound)
    return memory, gate_w, gate_b, cand_w, cand_b


# ----------------------------------------------------------------------------
# Pure-JAX references
# ----------------------------------------------------------------------------
def reference_forward(z, memory, temperature):
    scores = jnp.einsum('bsd,md->bsm', z, memory) / temperature
    attn = jax.nn.softmax(scores, axis=-1)
    attended = jnp.einsum('bsm,md->bsd', attn, memory)
    return attended, attn


def reference_forward_mixed(z, memory, temperature, dtype):
    """Matches the kernel's mixed-precision contraction: operands rounded to
    `dtype`, products / accumulation in f32."""
    inv_temp = 1.0 / float(temperature)
    zc = z.astype(dtype).astype(jnp.float32)
    mem_s = (memory * inv_temp).astype(dtype).astype(jnp.float32)
    mem_c = memory.astype(dtype).astype(jnp.float32)
    scores = jnp.einsum('bsd,md->bsm', zc, mem_s)
    attn = jax.nn.softmax(scores, axis=-1)
    attended = jnp.einsum('bsm,md->bsd', attn, mem_c)
    return attended, attn


def reference_update(z, attn, memory, gate_w, gate_b, cand_w, cand_b):
    D = z.shape[-1]
    M = memory.shape[0]
    z_flat = z.reshape(-1, D)
    a_flat = attn.reshape(-1, M)
    weighted_input = a_flat.T @ z_flat
    attn_sum = jnp.maximum(a_flat.sum(axis=0, keepdims=True).T, 1e-8)
    avg_input = weighted_input / attn_sum
    cat = jnp.concatenate([memory, avg_input], axis=-1)
    gate = jax.nn.sigmoid(cat @ gate_w.T + gate_b)
    cand = jnp.tanh(cat @ cand_w.T + cand_b)
    return gate * memory + (1.0 - gate) * cand


if __name__ == "__main__":
    batch, seq, latent_dim, memory_size = 2, 9, 32, 16
    temperature = 0.1

    key = jax.random.PRNGKey(0)
    k_params, k_z = jax.random.split(key)
    memory, gate_w, gate_b, cand_w, cand_b = init_params(
        k_params, memory_size, latent_dim)
    z = jax.random.normal(k_z, (batch, seq, latent_dim), jnp.float32)

    ref_attended, ref_attn = reference_forward(z, memory, temperature)
    ref_new_mem = reference_update(z, ref_attn, memory,
                                   gate_w, gate_b, cand_w, cand_b)

    # --- exact-precision (f32 MXU) runs: tight tolerance vs the f32 reference.
    # tile_n=8 forces multi-tile grids (and a 2-chunk cross-core reduction on the
    # training path) so padded rows / cross-chunk combine are exercised at test size.
    attended, attn = semantic_memory_forward(
        z, memory, temperature, tile_n=8, mxu_dtype=jnp.float32)
    jax.block_until_ready((attended, attn))
    assert jnp.allclose(attended, ref_attended, atol=5e-3, rtol=5e-3)
    assert jnp.allclose(attn, ref_attn, atol=5e-3, rtol=5e-3)

    attended_t, attn_t, new_memory = semantic_memory_forward_and_update(
        z, memory, temperature, gate_w, gate_b, cand_w, cand_b,
        tile_n=8, num_chunks=2, mxu_dtype=jnp.float32)
    jax.block_until_ready((attended_t, attn_t, new_memory))
    assert new_memory.shape == (memory_size, latent_dim)
    assert jnp.allclose(attended_t, ref_attended, atol=5e-3, rtol=5e-3)
    assert jnp.allclose(attn_t, ref_attn, atol=5e-3, rtol=5e-3)
    assert jnp.allclose(new_memory, ref_new_mem, atol=5e-3, rtol=5e-3)

    # --- default perf path (bf16 MXU operands): compare against the matching
    # mixed-precision reference; the GRU update is checked against a reference
    # driven by the kernel's own attention weights (as the torch module does).
    mref_attended, mref_attn = reference_forward_mixed(
        z, memory, temperature, jnp.bfloat16)

    attended_b, attn_b = semantic_memory_forward(z, memory, temperature)
    jax.block_until_ready((attended_b, attn_b))
    assert jnp.allclose(attended_b, mref_attended, atol=1e-2, rtol=1e-2)
    assert jnp.allclose(attn_b, mref_attn, atol=1e-2, rtol=1e-2)

    attended_tb, attn_tb, new_memory_b = semantic_memory_forward_and_update(
        z, memory, temperature, gate_w, gate_b, cand_w, cand_b)
    jax.block_until_ready((attended_tb, attn_tb, new_memory_b))
    mref_new_mem = reference_update(z, attn_tb, memory,
                                    gate_w, gate_b, cand_w, cand_b)
    assert jnp.allclose(attended_tb, mref_attended, atol=1e-2, rtol=1e-2)
    assert jnp.allclose(attn_tb, mref_attn, atol=1e-2, rtol=1e-2)
    assert jnp.allclose(new_memory_b, mref_new_mem, atol=1e-2, rtol=1e-2)

    print("KERNEL_OK")
</pallas_src>

<mosaic_0001>
module attributes {stable_mosaic.version = 11 : i64} {
  func.func @_fwd_kernel(%arg0: i32, %arg1: memref<8x128xf32, #tpu.memory_space<vmem>>, %arg2: memref<128x128xf32, #tpu.memory_space<vmem>>, %arg3: memref<128x128xf32, #tpu.memory_space<vmem>>, %arg4: memref<8x128xf32, #tpu.memory_space<vmem>>, %arg5: memref<8x128xf32, #tpu.memory_space<vmem>>) attributes {dimension_semantics = [#tpu.dimension_semantics<parallel>], iteration_bounds = array<i64: 3>, scalar_prefetch = 0 : i64, scratch_operands = 0 : i64, tpu.core_type = #tpu.core_type<tc>, window_params = [{transform_indices = @transform_0, window_bounds = array<i64: 8, 128>}, {pipeline_mode = #tpu.pipeline_mode<synchronous>, transform_indices = @transform_1, window_bounds = array<i64: 128, 128>}, {pipeline_mode = #tpu.pipeline_mode<synchronous>, transform_indices = @transform_2, window_bounds = array<i64: 128, 128>}, {transform_indices = @transform_3, window_bounds = array<i64: 8, 128>}, {transform_indices = @transform_4, window_bounds = array<i64: 8, 128>}]} {
    %c0 = arith.constant 0 : index
    %c0_0 = arith.constant 0 : index
    %0 = vector.load %arg1[%c0, %c0_0] : memref<8x128xf32, #tpu.memory_space<vmem>>, vector<8x128xf32>
    %c0_1 = arith.constant 0 : index
    %c0_2 = arith.constant 0 : index
    %1 = vector.load %arg2[%c0_1, %c0_2] : memref<128x128xf32, #tpu.memory_space<vmem>>, vector<128x128xf32>
    %cst = arith.constant dense<0.000000e+00> : vector<8x128xf32>
    %2 = tpu.matmul %0, %1, %cst {dimension_numbers = #tpu.dot_dimension_numbers<[1], [0], [0], [1], [0, 0, 1, 1], [], []>} : vector<8x128xf32>, vector<128x128xf32>, vector<8x128xf32> -> vector<8x128xf32>
    %3 = tpu.iota {dimensions = array<i32: 1>} : vector<8x128xi32>
    %c16_i32 = arith.constant 16 : i32
    %4 = vector.broadcast %c16_i32 : i32 to vector<8x128xi32>
    %5 = arith.cmpi slt, %3, %4 : vector<8x128xi32>
    %cst_3 = arith.constant -1.000000e+30 : f32
    %6 = vector.broadcast %cst_3 : f32 to vector<8x128xf32>
    %7 = arith.select %5, %2, %6 : vector<8x128xi1>, vector<8x128xf32>
    %cst_4 = arith.constant dense<0xFF800000> : vector<8xf32>
    %8 = vector.multi_reduction <maximumf>, %7, %cst_4 [1] : vector<8x128xf32> to vector<8xf32>
    %9 = vector.shape_cast %8 : vector<8xf32> to vector<8x1xf32>
    %10 = vector.broadcast %9 : vector<8x1xf32> to vector<8x128xf32>
    %11 = arith.subf %7, %10 : vector<8x128xf32>
    %12 = math.exp %11 : vector<8x128xf32>
    %cst_5 = arith.constant dense<0.000000e+00> : vector<8xf32>
    %13 = vector.multi_reduction <add>, %12, %cst_5 [1] : vector<8x128xf32> to vector<8xf32>
    %14 = vector.shape_cast %13 : vector<8xf32> to vector<8x1xf32>
    %15 = tpu.reciprocal %14 {approx = true} : vector<8x1xf32> -> vector<8x1xf32>
    %16 = vector.broadcast %15 : vector<8x1xf32> to vector<8x128xf32>
    %17 = arith.mulf %12, %16 : vector<8x128xf32>
    %c0_6 = arith.constant 0 : index
    %c0_7 = arith.constant 0 : index
    %18 = vector.load %arg5[%c0_6, %c0_7] : memref<8x128xf32, #tpu.memory_space<vmem>>, vector<8x128xf32>
    tpu.vector_store %arg5[%c0_6, %c0_7], %17 {strides = array<i32>} : memref<8x128xf32, #tpu.memory_space<vmem>>, vector<8x128xf32>,
    %c0_8 = arith.constant 0 : index
    %c0_9 = arith.constant 0 : index
    %19 = vector.load %arg3[%c0_8, %c0_9] : memref<128x128xf32, #tpu.memory_space<vmem>>, vector<128x128xf32>
    %cst_10 = arith.constant dense<0.000000e+00> : vector<8x128xf32>
    %20 = tpu.matmul %17, %19, %cst_10 {dimension_numbers = #tpu.dot_dimension_numbers<[1], [0], [0], [1], [0, 0, 1, 1], [], []>} : vector<8x128xf32>, vector<128x128xf32>, vector<8x128xf32> -> vector<8x128xf32>
    %c0_11 = arith.constant 0 : index
    %c0_12 = arith.constant 0 : index
    %21 = vector.load %arg4[%c0_11, %c0_12] : memref<8x128xf32, #tpu.memory_space<vmem>>, vector<8x128xf32>
    tpu.vector_store %arg4[%c0_11, %c0_12], %20 {strides = array<i32>} : memref<8x128xf32, #tpu.memory_space<vmem>>, vector<8x128xf32>,
    return
  }
  func.func @transform_0(%arg0: i32) -> (i32, i32) {
    %c0_i32 = arith.constant 0 : i32
    %c0_i32_0 = arith.constant 0 : i32
    return %arg0, %c0_i32 : i32, i32
  }
  func.func @transform_1(%arg0: i32) -> (i32, i32) {
    %c0_i32 = arith.constant 0 : i32
    %c0_i32_0 = arith.constant 0 : i32
    %c0_i32_1 = arith.constant 0 : i32
    return %c0_i32, %c0_i32_0 : i32, i32
  }
  func.func @transform_2(%arg0: i32) -> (i32, i32) {
    %c0_i32 = arith.constant 0 : i32
    %c0_i32_0 = arith.constant 0 : i32
    %c0_i32_1 = arith.constant 0 : i32
    return %c0_i32, %c0_i32_0 : i32, i32
  }
  func.func @transform_3(%arg0: i32) -> (i32, i32) {
    %c0_i32 = arith.constant 0 : i32
    %c0_i32_0 = arith.constant 0 : i32
    return %arg0, %c0_i32 : i32, i32
  }
  func.func @transform_4(%arg0: i32) -> (i32, i32) {
    %c0_i32 = arith.constant 0 : i32
    %c0_i32_0 = arith.constant 0 : i32
    return %arg0, %c0_i32 : i32, i32
  }
}

</mosaic_0001>

<llo_original>
// kernel: tpu_custom_call.1
$region0: #{tpu_custom_call.1}
  #allocation0 [shape = 'u32[]', space=smem, size = 0x4, offset = 0x4, fixed_abs, tag = 'smem constant byte address 0x4 - core index']
  #allocation1 [shape = 'u32[144,128]{1,0:T(1,128)}', space=vmem, size = 0x12000, scoped, tag = 'internal scratch']
  %s0 = inlined_call_operand.hbm [shape: f32[24,128], index: 0, kind: input, shape index: {}]
  %s1 = inlined_call_operand.hbm [shape: f32[128,128], index: 1, kind: input, shape index: {}]
  %s2 = inlined_call_operand.hbm [shape: f32[128,128], index: 2, kind: input, shape index: {}]
  %s3 = inlined_call_operand.hbm [shape: f32[24,128], index: 3, kind: output, shape index: {0}]
  %s4 = inlined_call_operand.hbm [shape: f32[24,128], index: 4, kind: output, shape index: {1}]
  %5 = xla_tuple %s3, %s4
  %s6 = sld [smem:[#allocation0]]
  $region65: #{tpu_custom_call.1} parent=0
    _
  %s8 = ssub.s32 1, %s6
  %s9 = scalar_select 0, %s8, %s6
  $region1: #{tpu_custom_call.1} parent=0
    #allocation2 [shape = 'u8[8192]{0}', space=vmem, size = 0x2000, scoped, tag = 'input window, operand 0']
    #allocation3 [shape = 's32[2]{0}', space=sflag, size = 0x8, scoped, tag = 'scoped memory for tpu_custom_call.1']
    #allocation4 [shape = 's32[2]{0}', space=sflag, size = 0x8, scoped, tag = 'scoped memory for tpu_custom_call.1']
    #allocation5 [shape = 'u8[65536]{0}', space=vmem, size = 0x10000, scoped, tag = 'input window, operand 1, single buffered']
    #allocation6 [shape = 's32[1]{0}', space=sflag, size = 0x4, scoped, tag = 'scoped memory for tpu_custom_call.1']
    #allocation7 [shape = 'u8[65536]{0}', space=vmem, size = 0x10000, scoped, tag = 'input window, operand 2, single buffered']
    #allocation8 [shape = 'u8[8192]{0}', space=vmem, size = 0x2000, scoped, tag = 'output window, operand 0']
    #allocation9 [shape = 'u8[8192]{0}', space=vmem, size = 0x2000, scoped, tag = 'output window, operand 1']
    #allocation10 [shape = 's32[2]{0}', space=sflag, size = 0x8, scoped, tag = 'scoped memory for tpu_custom_call.1']
    %10 = vsyncpa [#allocation3], 0
    %s11 = scalar_lea.sflag [#allocation3], 1
    %12 = vsyncpa %s11, 0
    %13 = vsyncpa [#allocation6], 0
    %14 = vsyncpa [#allocation4], 0
    %s15 = scalar_lea.sflag [#allocation4], 1
    %16 = vsyncpa %s15, 0
    %17 = vsyncpa [#allocation10], 0
    %s18 = scalar_lea.sflag [#allocation10], 1
    %19 = vsyncpa %s18, 0
    loop: start=0, step=1, limit=5
    $region2: #{tpu_custom_call.1} parent=1 // loop_pre_header
      _
    $region3: #{tpu_custom_call.1} parent=1 // loop_header
      %s21 = sphi 0, %s25
      %p22 = scmp.ge.s32.totalorder %s21, 5
      %s31 = sphi 0, %s33
      %s34 = sphi 0, %s31
      %s35 = sphi 0, %s34
      %s51 = sphi 0, %s35
      %s55 = sphi 0, %s55
      %s57 = sphi 0, %s55
      %s58 = sphi 0, %s57
      %s72 = sphi 0, %s58
      %s76 = sphi 0, %s76
      %s78 = sphi 0, %s76
      %s79 = sphi 0, %s78
      %s93 = sphi 0, %s79
      %s99 = sphi 0, %s101
      %s102 = sphi 0, %s99
      %s103 = sphi 0, %s102
      %s119 = sphi 0, %s103
      %s125 = sphi 0, %s127
      %s128 = sphi 0, %s125
      %s129 = sphi 0, %s128
      %s145 = sphi 0, %s129
    $region4: #{tpu_custom_call.1} parent=1 // loop_header_branch
      %24 = sbr.rel (%p22) target = $region8
    $region5: #{tpu_custom_call.1} parent=1 // loop_body
      %s26 = ssub.s32 %s21, 1
      %s27 = ssub.s32 %s21, 2
      %s28 = sadd.s32 %s21, 1
      %s29 = ssub.s32 %s21, %s28
      %p30 = scmp.eq.s32.totalorder %s29, 0
      %s32 = sadd.s32 %s31, 1
      %s33 = scalar_select %p30, %s31, %s32
      %p36 = pneg %p30
      %p37 = scmp.eq.s32.totalorder %s21, 2
      %p38 = por %p36, %p37
      %p39 = scmp.ne.s32.totalorder %s31, %s34
      %p40 = scmp.eq.s32.totalorder %s21, 0
      %p41 = por %p39, %p40
      %p42 = scmp.ne.s32.totalorder %s31, %s34
      %p43 = scmp.eq.s32.totalorder %s26, 2
      %p44 = por %p42, %p43
      %p45 = scmp.ne.s32.totalorder %s34, %s35
      %p46 = scmp.eq.s32.totalorder %s26, 0
      %p47 = por %p45, %p46
      %p48 = scmp.ne.s32.totalorder %s34, %s35
      %p49 = scmp.eq.s32.totalorder %s27, 2
      %p50 = por %p48, %p49
      %p52 = scmp.ne.s32.totalorder %s35, %s51
      %p53 = scmp.eq.s32.totalorder %s27, 0
      %p54 = por %p52, %p53
      %s56 = sadd.s32 %s55, 1
      %p59 = scmp.eq.s32.totalorder %s21, 2
      %p60 = scmp.ne.s32.totalorder %s55, %s57
      %p61 = scmp.eq.s32.totalorder %s21, 0
      %p62 = por %p60, %p61
      %p63 = scmp.ne.s32.totalorder %s55, %s57
      %p64 = scmp.eq.s32.totalorder %s26, 2
      %p65 = por %p63, %p64
      %p66 = scmp.ne.s32.totalorder %s57, %s58
      %p67 = scmp.eq.s32.totalorder %s26, 0
      %p68 = por %p66, %p67
      %p69 = scmp.ne.s32.totalorder %s57, %s58
      %p70 = scmp.eq.s32.totalorder %s27, 2
      %p71 = por %p69, %p70
      %p73 = scmp.ne.s32.totalorder %s58, %s72
      %p74 = scmp.eq.s32.totalorder %s27, 0
      %p75 = por %p73, %p74
      %s77 = sadd.s32 %s76, 1
      %p80 = scmp.eq.s32.totalorder %s21, 2
      %p81 = scmp.ne.s32.totalorder %s76, %s78
      %p82 = scmp.eq.s32.totalorder %s21, 0
      %p83 = por %p81, %p82
      %p84 = scmp.ne.s32.totalorder %s76, %s78
      %p85 = scmp.eq.s32.totalorder %s26, 2
      %p86 = por %p84, %p85
      %p87 = scmp.ne.s32.totalorder %s78, %s79
      %p88 = scmp.eq.s32.totalorder %s26, 0
      %p89 = por %p87, %p88
      %p90 = scmp.ne.s32.totalorder %s78, %s79
      %p91 = scmp.eq.s32.totalorder %s27, 2
      %p92 = por %p90, %p91
      %p94 = scmp.ne.s32.totalorder %s79, %s93
      %p95 = scmp.eq.s32.totalorder %s27, 0
      %p96 = por %p94, %p95
      %s97 = ssub.s32 %s21, %s28
      %p98 = scmp.eq.s32.totalorder %s97, 0
      %s100 = sadd.s32 %s99, 1
      %s101 = scalar_select %p98, %s99, %s100
      %p104 = pneg %p98
      %p105 = scmp.eq.s32.totalorder %s21, 2
      %p106 = por %p104, %p105
      %p107 = scmp.ne.s32.totalorder %s99, %s102
      %p108 = scmp.eq.s32.totalorder %s21, 0
      %p109 = por %p107, %p108
      %p110 = scmp.ne.s32.totalorder %s99, %s102
      %p111 = scmp.eq.s32.totalorder %s26, 2
      %p112 = por %p110, %p111
      %p113 = scmp.ne.s32.totalorder %s102, %s103
      %p114 = scmp.eq.s32.totalorder %s26, 0
      %p115 = por %p113, %p114
      %p116 = scmp.ne.s32.totalorder %s102, %s103
      %p117 = scmp.eq.s32.totalorder %s27, 2
      %p118 = por %p116, %p117
      %p120 = scmp.ne.s32.totalorder %s103, %s119
      %p121 = scmp.eq.s32.totalorder %s27, 0
      %p122 = por %p120, %p121
      %s123 = ssub.s32 %s21, %s28
      %p124 = scmp.eq.s32.totalorder %s123, 0
      %s126 = sadd.s32 %s125, 1
      %s127 = scalar_select %p124, %s125, %s126
      %p130 = pneg %p124
      %p131 = scmp.eq.s32.totalorder %s21, 2
      %p132 = por %p130, %p131
      %p133 = scmp.ne.s32.totalorder %s125, %s128
      %p134 = scmp.eq.s32.totalorder %s21, 0
      %p135 = por %p133, %p134
      %p136 = scmp.ne.s32.totalorder %s125, %s128
      %p137 = scmp.eq.s32.totalorder %s26, 2
      %p138 = por %p136, %p137
      %p139 = scmp.ne.s32.totalorder %s128, %s129
      %p140 = scmp.eq.s32.totalorder %s26, 0
      %p141 = por %p139, %p140
      %p142 = scmp.ne.s32.totalorder %s128, %s129
      %p143 = scmp.eq.s32.totalorder %s27, 2
      %p144 = por %p142, %p143
      %p146 = scmp.ne.s32.totalorder %s129, %s145
      %p147 = scmp.eq.s32.totalorder %s27, 0
      %p148 = por %p146, %p147
      %p149 = scmp.le.s32.totalorder 1, %s21
      %p150 = scmp.lt.s32.totalorder %s21, 4
      %p151 = pnand %p149, %p150
      %p152 = pneg %p151
      // Predicated region
      $region9: #{tpu_custom_call.1} parent=5 // pred_check
        _
      $region10: #{tpu_custom_call.1} parent=5 // pred_check_branch
        %154 = sbr.rel (%p151) target = $region12
      $region11: #{tpu_custom_call.1} parent=5 // pred_region
        %s155 = ssub.s32 %s21, 1
        // Predicated region
        $region13: #{tpu_custom_call.1} parent=11 // pred_check
          %p156 = pneg %p68
        $region14: #{tpu_custom_call.1} parent=11 // pred_check_branch
          %158 = sbr.rel (%p156) target = $region16
        $region15: #{tpu_custom_call.1} parent=11 // pred_region
          %s160 = ssub.s32 2048, 2048
          %161 = vsyncadd [#allocation6], %s160
          %s162 = sshll.u32 [#allocation5], 4
          %s163 = int_to_ptr.vmem [resolvable:$true] %s162
          %168 = dma.hbm_to_vmem [thread:$0]  %s1, 2048, %s163, [#allocation6], 128, 128, 8
        $region16: #{tpu_custom_call.1} parent=11 // pred_fallthru
          _
        // Predicated region
        $region17: #{tpu_custom_call.1} parent=11 // pred_check
          %p169 = pneg %p89
        $region18: #{tpu_custom_call.1} parent=11 // pred_check_branch
          %171 = sbr.rel (%p169) target = $region20
        $region19: #{tpu_custom_call.1} parent=11 // pred_region
          %s173 = ssub.s32 2048, 2048
          %174 = vsyncadd [#allocation6], %s173
          %s175 = sshll.u32 [#allocation7], 4
          %s176 = int_to_ptr.vmem [resolvable:$true] %s175
          %181 = dma.hbm_to_vmem [thread:$0]  %s2, 2048, %s176, [#allocation6], 128, 128, 8
        $region20: #{tpu_custom_call.1} parent=11 // pred_fallthru
          _
      $region12: #{tpu_custom_call.1} parent=5 // pred_fallthru
        _
      %p182 = scmp.lt.s32.totalorder %s21, 3
      // Predicated region
      $region21: #{tpu_custom_call.1} parent=5 // pred_check
        %p183 = pneg %p182
      $region22: #{tpu_custom_call.1} parent=5 // pred_check_branch
        %185 = sbr.rel (%p183) target = $region24
      $region23: #{tpu_custom_call.1} parent=5 // pred_region
        // Predicated region
        $region25: #{tpu_custom_call.1} parent=23 // pred_check
          %p186 = pneg %p41
        $region26: #{tpu_custom_call.1} parent=23 // pred_check_branch
          %188 = sbr.rel (%p186) target = $region28
        $region27: #{tpu_custom_call.1} parent=23 // pred_region
          %s189 = sand.u32 %s31, 1
          %s190 = scalar_lea.sflag [#allocation3], %s189
          %s191 = sand.u32 %s31, 1
          %s192 = smul.addr %s191, 8
          %s193 = scalar_lea.vmem [#allocation2], %s192
          %s195 = ssub.s32 128, 128
          %196 = vsyncadd %s190, %s195
          %s197 = smul.addr %s21, 128
          %s198 = scalar_lea.hbm %s0, %s197
          %s200 = sshll.u32 %s193, 4
          %s201 = int_to_ptr.vmem [resolvable:$true] %s200
          %203 = dma.hbm_to_vmem [thread:$0]  %s198, 128, %s201, %s190
        $region28: #{tpu_custom_call.1} parent=23 // pred_fallthru
          _
      $region24: #{tpu_custom_call.1} parent=5 // pred_fallthru
        _
      %p204 = scmp.le.s32.totalorder 1, %s21
      %p205 = scmp.lt.s32.totalorder %s21, 4
      %p206 = pnand %p204, %p205
      %p207 = pneg %p206
      // Predicated region
      $region29: #{tpu_custom_call.1} parent=5 // pred_check
        _
      $region30: #{tpu_custom_call.1} parent=5 // pred_check_branch
        %209 = sbr.rel (%p206) target = $region32
      $region31: #{tpu_custom_call.1} parent=5 // pred_region
        %s210 = ssub.s32 %s21, 1
        %s211 = sand.u32 %s34, 1
        %s212 = scalar_lea.sflag [#allocation3], %s211
        %s213 = sand.u32 %s34, 1
        %s214 = smul.addr %s213, 8
        %s215 = scalar_lea.vmem [#allocation2], %s214
        // Predicated region
        $region33: #{tpu_custom_call.1} parent=31 // pred_check
          %p216 = pneg %p47
        $region34: #{tpu_custom_call.1} parent=31 // pred_check_branch
          %218 = sbr.rel (%p216) target = $region36
        $region35: #{tpu_custom_call.1} parent=31 // pred_region
          %219 = dma.done %s212, 128
        $region36: #{tpu_custom_call.1} parent=31 // pred_fallthru
          _
        // Predicated region
        $region37: #{tpu_custom_call.1} parent=31 // pred_check
          %p220 = pneg %p68
        $region38: #{tpu_custom_call.1} parent=31 // pred_check_branch
          %222 = sbr.rel (%p220) target = $region40
        $region39: #{tpu_custom_call.1} parent=31 // pred_region
          %223 = dma.done [#allocation6], 2048
        $region40: #{tpu_custom_call.1} parent=31 // pred_fallthru
          _
        // Predicated region
        $region41: #{tpu_custom_call.1} parent=31 // pred_check
          %p224 = pneg %p89
        $region42: #{tpu_custom_call.1} parent=31 // pred_check_branch
          %226 = sbr.rel (%p224) target = $region44
        $region43: #{tpu_custom_call.1} parent=31 // pred_region
          %227 = dma.done [#allocation6], 2048
        $region44: #{tpu_custom_call.1} parent=31 // pred_fallthru
          _
        %s228 = sand.u32 %s34, 1
        %s229 = scalar_lea.sflag [#allocation3], %s228
        %s230 = sand.u32 %s34, 1
        %s231 = smul.addr %s230, 8
        %s232 = scalar_lea.vmem [#allocation2], %s231
        %p233 = pneg %p47
        %p234 = pneg %p44
        %p235 = pneg %p68
        %p236 = pneg %p65
        %p237 = pneg %p89
        %p238 = pneg %p86
        %p239 = pneg %p115
        %p240 = pneg %p112
        %s241 = sand.u32 %s102, 1
        %s242 = scalar_lea.sflag [#allocation4], %s241
        %s243 = sand.u32 %s102, 1
        %s244 = smul.addr %s243, 8
        %s245 = scalar_lea.vmem [#allocation8], %s244
        %p246 = pneg %p141
        %p247 = pneg %p138
        %s248 = sand.u32 %s128, 1
        %s249 = scalar_lea.sflag [#allocation10], %s248
        %s250 = sand.u32 %s128, 1
        %s251 = smul.addr %s250, 8
        %s252 = scalar_lea.vmem [#allocation9], %s251
        %v253 = vld [vmem:[%s215] sm:$0xff]
        %v254 = vld [vmem:[#allocation5] sm:$0xff]
        %v255 = vld [vmem:[#allocation5 + $0x8] sm:$0xff]
        %v256 = vld [vmem:[#allocation5 + $0x10] sm:$0xff]
        %v257 = vld [vmem:[#allocation5 + $0x18] sm:$0xff]
        %v258 = vld [vmem:[#allocation5 + $0x20] sm:$0xff]
        %v259 = vld [vmem:[#allocation5 + $0x28] sm:$0xff]
        %v260 = vld [vmem:[#allocation5 + $0x30] sm:$0xff]
        %v261 = vld [vmem:[#allocation5 + $0x38] sm:$0xff]
        %v262 = vld [vmem:[#allocation5 + $0x40] sm:$0xff]
        %v263 = vld [vmem:[#allocation5 + $0x48] sm:$0xff]
        %v264 = vld [vmem:[#allocation5 + $0x50] sm:$0xff]
        %v265 = vld [vmem:[#allocation5 + $0x58] sm:$0xff]
        %v266 = vld [vmem:[#allocation5 + $0x60] sm:$0xff]
        %v267 = vld [vmem:[#allocation5 + $0x68] sm:$0xff]
        %v268 = vld [vmem:[#allocation5 + $0x70] sm:$0xff]
        %v269 = vld [vmem:[#allocation5 + $0x78] sm:$0xff]
        %270 = vmatprep.subr.mxu0 0.0
        %271 = vmatpush1.msra.mxu0 %v269
        %272 = vmatprep.subr.mxu0 0.0
        %273 = vmatpush1.msra.mxu0 %v268
        %274 = vmatprep.subr.mxu0 0.0
        %275 = vmatpush1.msra.mxu0 %v267
        %276 = vmatprep.subr.mxu0 0.0
        %277 = vmatpush1.msra.mxu0 %v266
        %278 = vmatprep.subr.mxu0 0.0
        %279 = vmatpush1.msra.mxu0 %v265
        %280 = vmatprep.subr.mxu0 0.0
        %281 = vmatpush1.msra.mxu0 %v264
        %282 = vmatprep.subr.mxu0 0.0
        %283 = vmatpush1.msra.mxu0 %v263
        %284 = vmatprep.subr.mxu0 0.0
        %285 = vmatpush1.msra.mxu0 %v262
        %286 = vmatprep.subr.mxu0 0.0
        %287 = vmatpush1.msra.mxu0 %v261
        %288 = vmatprep.subr.mxu0 0.0
        %289 = vmatpush1.msra.mxu0 %v260
        %290 = vmatprep.subr.mxu0 0.0
        %291 = vmatpush1.msra.mxu0 %v259
        %292 = vmatprep.subr.mxu0 0.0
        %293 = vmatpush1.msra.mxu0 %v258
        %294 = vmatprep.subr.mxu0 0.0
        %295 = vmatpush1.msra.mxu0 %v257
        %296 = vmatprep.subr.mxu0 0.0
        %297 = vmatpush1.msra.mxu0 %v256
        %298 = vmatprep.subr.mxu0 0.0
        %299 = vmatpush1.msra.mxu0 %v255
        %300 = vmatprep.subr.mxu0 0.0
        %301 = vmatpush1.msra.mxu0 %v254
        %302 = vmatprep.subr.mxu0 0.0
        %303 = vmatpush2.msra.mxu0 0.0
        %304 = vmatprep.subr.mxu0 0.0
        %305 = vmatpush2.msra.mxu0 0.0
        %306 = vmatprep.subr.mxu0 0.0
        %307 = vmatpush2.msra.mxu0 0.0
        %308 = vmatprep.subr.mxu0 0.0
        %309 = vmatpush2.msra.mxu0 0.0
        %310 = vmatprep.subr.mxu0 0.0
        %311 = vmatpush2.msra.mxu0 0.0
        %312 = vmatprep.subr.mxu0 0.0
        %313 = vmatpush2.msra.mxu0 0.0
        %314 = vmatprep.subr.mxu0 0.0
        %315 = vmatpush2.msra.mxu0 0.0
        %316 = vmatprep.subr.mxu0 0.0
        %317 = vmatpush2.msra.mxu0 0.0
        %318 = vmatprep.subr.mxu0 0.0
        %319 = vmatpush2.msra.mxu0 0.0
        %320 = vmatprep.subr.mxu0 0.0
        %321 = vmatpush2.msra.mxu0 0.0
        %322 = vmatprep.subr.mxu0 0.0
        %323 = vmatpush2.msra.mxu0 0.0
        %324 = vmatprep.subr.mxu0 0.0
        %325 = vmatpush2.msra.mxu0 0.0
        %326 = vmatprep.subr.mxu0 0.0
        %327 = vmatpush2.msra.mxu0 0.0
        %328 = vmatprep.subr.mxu0 0.0
        %329 = vmatpush2.msra.mxu0 0.0
        %330 = vmatprep.subr.mxu0 0.0
        %331 = vmatpush2.msra.mxu0 0.0
        %332 = vmatprep.subr.mxu0 0.0
        %333 = vmatpush2.msra.mxu0 0.0
        %334 = vmatprep.mubr.f32.mxu0 0.0
        %335 = vmatmul.mubr.f32.gmra.mxu0 %v253
        %v336 = vpop.f32.mrf.mxu0
        %v337 = vadd.f32 0.0, %v336
        %v338 = vpop.f32.mrf.mxu0
        %339 = vdwg.mxu0
        %v340 = vlaneseq
        %v341 = vand.u32 %v340, 127
        %vm342 = vcmp.lt.s32.totalorder %v341, 16
        %v343 = vsel %vm342, %v337, -1e+30
        %344 = vmax.xlane.f32.xlu0 %v343
        %v345 = vpop.xlane.xlu0 %344
        %v346 = vsub.f32 %v343, %v345
        %v347 = vmul.f32 %v346, 1.442695
        %v348 = vpow.pop %v347
        %349 = vadd.xlane.f32.xlu0 %v348
        %v350 = vpop.xlane.xlu0 %349
        %v351 = vrcp.pop %v350
        %v352 = vmul.f32 %v348, %v351
        %353 = vst [vmem:[%s252] sm:$0xff] %v352
        %v354 = vld [vmem:[#allocation7] sm:$0xff]
        %v355 = vld [vmem:[#allocation7 + $0x8] sm:$0xff]
        %v356 = vld [vmem:[#allocation7 + $0x10] sm:$0xff]
        %v357 = vld [vmem:[#allocation7 + $0x18] sm:$0xff]
        %v358 = vld [vmem:[#allocation7 + $0x20] sm:$0xff]
        %v359 = vld [vmem:[#allocation7 + $0x28] sm:$0xff]
        %v360 = vld [vmem:[#allocation7 + $0x30] sm:$0xff]
        %v361 = vld [vmem:[#allocation7 + $0x38] sm:$0xff]
        %v362 = vld [vmem:[#allocation7 + $0x40] sm:$0xff]
        %v363 = vld [vmem:[#allocation7 + $0x48] sm:$0xff]
        %v364 = vld [vmem:[#allocation7 + $0x50] sm:$0xff]
        %v365 = vld [vmem:[#allocation7 + $0x58] sm:$0xff]
        %v366 = vld [vmem:[#allocation7 + $0x60] sm:$0xff]
        %v367 = vld [vmem:[#allocation7 + $0x68] sm:$0xff]
        %v368 = vld [vmem:[#allocation7 + $0x70] sm:$0xff]
        %v369 = vld [vmem:[#allocation7 + $0x78] sm:$0xff]
        %370 = vmatprep.subr.mxu0 0.0
        %371 = vmatpush1.msra.mxu0 %v369
        %372 = vmatprep.subr.mxu0 0.0
        %373 = vmatpush1.msra.mxu0 %v368
        %374 = vmatprep.subr.mxu0 0.0
        %375 = vmatpush1.msra.mxu0 %v367
        %376 = vmatprep.subr.mxu0 0.0
        %377 = vmatpush1.msra.mxu0 %v366
        %378 = vmatprep.subr.mxu0 0.0
        %379 = vmatpush1.msra.mxu0 %v365
        %380 = vmatprep.subr.mxu0 0.0
        %381 = vmatpush1.msra.mxu0 %v364
        %382 = vmatprep.subr.mxu0 0.0
        %383 = vmatpush1.msra.mxu0 %v363
        %384 = vmatprep.subr.mxu0 0.0
        %385 = vmatpush1.msra.mxu0 %v362
        %386 = vmatprep.subr.mxu0 0.0
        %387 = vmatpush1.msra.mxu0 %v361
        %388 = vmatprep.subr.mxu0 0.0
        %389 = vmatpush1.msra.mxu0 %v360
        %390 = vmatprep.subr.mxu0 0.0
        %391 = vmatpush1.msra.mxu0 %v359
        %392 = vmatprep.subr.mxu0 0.0
        %393 = vmatpush1.msra.mxu0 %v358
        %394 = vmatprep.subr.mxu0 0.0
        %395 = vmatpush1.msra.mxu0 %v357
        %396 = vmatprep.subr.mxu0 0.0
        %397 = vmatpush1.msra.mxu0 %v356
        %398 = vmatprep.subr.mxu0 0.0
        %399 = vmatpush1.msra.mxu0 %v355
        %400 = vmatprep.subr.mxu0 0.0
        %401 = vmatpush1.msra.mxu0 %v354
        %402 = vmatprep.subr.mxu0 0.0
        %403 = vmatpush2.msra.mxu0 0.0
        %404 = vmatprep.subr.mxu0 0.0
        %405 = vmatpush2.msra.mxu0 0.0
        %406 = vmatprep.subr.mxu0 0.0
        %407 = vmatpush2.msra.mxu0 0.0
        %408 = vmatprep.subr.mxu0 0.0
        %409 = vmatpush2.msra.mxu0 0.0
        %410 = vmatprep.subr.mxu0 0.0
        %411 = vmatpush2.msra.mxu0 0.0
        %412 = vmatprep.subr.mxu0 0.0
        %413 = vmatpush2.msra.mxu0 0.0
        %414 = vmatprep.subr.mxu0 0.0
        %415 = vmatpush2.msra.mxu0 0.0
        %416 = vmatprep.subr.mxu0 0.0
        %417 = vmatpush2.msra.mxu0 0.0
        %418 = vmatprep.subr.mxu0 0.0
        %419 = vmatpush2.msra.mxu0 0.0
        %420 = vmatprep.subr.mxu0 0.0
        %421 = vmatpush2.msra.mxu0 0.0
        %422 = vmatprep.subr.mxu0 0.0
        %423 = vmatpush2.msra.mxu0 0.0
        %424 = vmatprep.subr.mxu0 0.0
        %425 = vmatpush2.msra.mxu0 0.0
        %426 = vmatprep.subr.mxu0 0.0
        %427 = vmatpush2.msra.mxu0 0.0
        %428 = vmatprep.subr.mxu0 0.0
        %429 = vmatpush2.msra.mxu0 0.0
        %430 = vmatprep.subr.mxu0 0.0
        %431 = vmatpush2.msra.mxu0 0.0
        %432 = vmatprep.subr.mxu0 0.0
        %433 = vmatpush2.msra.mxu0 0.0
        %434 = vmatprep.mubr.f32.mxu0 0.0
        %435 = vmatmul.mubr.f32.gmra.mxu0 %v352
        %v436 = vpop.f32.mrf.mxu0
        %v437 = vadd.f32 0.0, %v436
        %v438 = vpop.f32.mrf.mxu0
        %439 = vdwg.mxu0
        %440 = vst [vmem:[%s245] sm:$0xff] %v437
        %s441 = sand.u32 %s102, 1
        %s442 = scalar_lea.sflag [#allocation4], %s441
        %s443 = sand.u32 %s102, 1
        %s444 = smul.addr %s443, 8
        %s445 = scalar_lea.vmem [#allocation8], %s444
        %s446 = sand.u32 %s128, 1
        %s447 = scalar_lea.sflag [#allocation10], %s446
        %s448 = sand.u32 %s128, 1
        %s449 = smul.addr %s448, 8
        %s450 = scalar_lea.vmem [#allocation9], %s449
        // Predicated region
        $region45: #{tpu_custom_call.1} parent=31 // pred_check
          %p451 = pneg %p112
        $region46: #{tpu_custom_call.1} parent=31 // pred_check_branch
          %453 = sbr.rel (%p451) target = $region48
        $region47: #{tpu_custom_call.1} parent=31 // pred_region
          %s455 = ssub.s32 128, 128
          %456 = vsyncadd %s442, %s455
          %s457 = smul.addr %s26, 128
          %s458 = scalar_lea.hbm %s3, %s457
          %s460 = sshll.u32 %s445, 4
          %s461 = int_to_ptr.vmem [resolvable:$true] %s460
          %463 = dma.vmem_to_hbm [thread:$0]  %s461, 128, %s458, %s442
        $region48: #{tpu_custom_call.1} parent=31 // pred_fallthru
          _
        // Predicated region
        $region49: #{tpu_custom_call.1} parent=31 // pred_check
          %p464 = pneg %p138
        $region50: #{tpu_custom_call.1} parent=31 // pred_check_branch
          %466 = sbr.rel (%p464) target = $region52
        $region51: #{tpu_custom_call.1} parent=31 // pred_region
          %s468 = ssub.s32 128, 128
          %469 = vsyncadd %s447, %s468
          %s470 = smul.addr %s26, 128
          %s471 = scalar_lea.hbm %s4, %s470
          %s473 = sshll.u32 %s450, 4
          %s474 = int_to_ptr.vmem [resolvable:$true] %s473
          %476 = dma.vmem_to_hbm [thread:$0]  %s474, 128, %s471, %s447
        $region52: #{tpu_custom_call.1} parent=31 // pred_fallthru
          _
      $region32: #{tpu_custom_call.1} parent=5 // pred_fallthru
        _
      %p477 = scmp.le.s32.totalorder 2, %s21
      // Predicated region
      $region53: #{tpu_custom_call.1} parent=5 // pred_check
        %p478 = pneg %p477
      $region54: #{tpu_custom_call.1} parent=5 // pred_check_branch
        %480 = sbr.rel (%p478) target = $region56
      $region55: #{tpu_custom_call.1} parent=5 // pred_region
        %s481 = ssub.s32 %s21, 2
        // Predicated region
        $region57: #{tpu_custom_call.1} parent=55 // pred_check
          %p482 = pneg %p118
        $region58: #{tpu_custom_call.1} parent=55 // pred_check_branch
          %484 = sbr.rel (%p482) target = $region60
        $region59: #{tpu_custom_call.1} parent=55 // pred_region
          %s485 = sand.u32 %s103, 1
          %s486 = scalar_lea.sflag [#allocation4], %s485
          %s487 = sand.u32 %s103, 1
          %s488 = smul.addr %s487, 8
          %s489 = scalar_lea.vmem [#allocation8], %s488
          %490 = dma.done %s486, 128
        $region60: #{tpu_custom_call.1} parent=55 // pred_fallthru
          _
        // Predicated region
        $region61: #{tpu_custom_call.1} parent=55 // pred_check
          %p491 = pneg %p144
        $region62: #{tpu_custom_call.1} parent=55 // pred_check_branch
          %493 = sbr.rel (%p491) target = $region64
        $region63: #{tpu_custom_call.1} parent=55 // pred_region
          %s494 = sand.u32 %s129, 1
          %s495 = scalar_lea.sflag [#allocation10], %s494
          %s496 = sand.u32 %s129, 1
          %s497 = smul.addr %s496, 8
          %s498 = scalar_lea.vmem [#allocation9], %s497
          %499 = dma.done %s495, 128
        $region64: #{tpu_custom_call.1} parent=55 // pred_fallthru
          _
      $region56: #{tpu_custom_call.1} parent=5 // pred_fallthru
        _
    $region6: #{tpu_custom_call.1} parent=1 // loop_footer
      %s25 = sadd.s32 1, %s21
    $region7: #{tpu_custom_call.1} parent=1 // loop_footer_branch
      %20 = sbr.rel target = $region3
    $region8: #{tpu_custom_call.1} parent=1 // loop_exit
      _
    %500 = vsyncpa [#allocation3], 1
    %s501 = scalar_lea.sflag [#allocation3], 1
    %502 = vsyncpa %s501, 1
    %503 = vsyncpa [#allocation6], 1
    %504 = vsyncpa [#allocation4], 1
    %s505 = scalar_lea.sflag [#allocation4], 1
    %506 = vsyncpa %s505, 1
    %507 = vsyncpa [#allocation10], 1
    %s508 = scalar_lea.sflag [#allocation10], 1
    %509 = vsyncpa %s508, 1

</llo_original>
